<compile_context>
chip_gen: v7x
topology: tpu7x:2x2x1
jax: 0.10.0
libtpu: 0.0.40
codegen_flags: <defaults>
</compile_context>

<pallas_src>
import numpy as np
import jax
import jax.numpy as jnp
from jax.experimental import pallas as pl
from jax.experimental.pallas import tpu as pltpu


# ----------------------------- Pallas kernel ------------------------------- #
def texture_kernel(x_ref, w11_ref, b1_ref, w12_ref, b2_ref,
                   wfa_ref, wfb_ref, bfc_ref, o_ref, pair_ref):
    x = x_ref[0]                                                  # (C, T)

    # conv11 (1x1, bias=False, BN scale folded into weight) + BN bias + ReLU
    y1 = jnp.dot(w11_ref[...], x, preferred_element_type=jnp.float32)   # (M, T)
    y1 = jnp.maximum(y1 + b1_ref[...], 0.0)

    # F.normalize(x, p=1, dim=channel): x / max(sum|x|, 1e-12)  (exact divide)
    denom = jnp.maximum(jnp.sum(jnp.abs(y1), axis=0, keepdims=True), 1e-12)
    y1 = y1 / denom

    # Gram (strict upper triangle, torch.triu diag=1) + conv12, fused as one
    # K = M*M matmul.  pair[i*M + j, t] = y1[i, t] * y1[j, t]; the triu
    # selection is folded into w12 (columns with i >= j are zero).
    M = y1.shape[0]
    for i in range(M):                                            # M small, static
        pair_ref[pl.ds(i * M, M), :] = y1[i:i + 1, :] * y1        # (M, T) row block
    y2 = jnp.dot(w12_ref[...], pair_ref[...],
                 preferred_element_type=jnp.float32)              # (Cout, T)
    y2 = jnp.maximum(y2 + b2_ref[...], 0.0)

    # fc(cat([y2, x0])) == Wfc[:, :Cout] @ y2 + Wfc[:, Cout:] @ x0 + b
    out = (jnp.dot(wfa_ref[...], y2, preferred_element_type=jnp.float32)
           + jnp.dot(wfb_ref[...], x, preferred_element_type=jnp.float32)
           + bfc_ref[...])
    o_ref[0] = out.astype(o_ref.dtype)


# ------------------------------- wrapper ------------------------------------ #
def texture_forward(x0, params, tile_pixels=8192):
    B, C, H, W = x0.shape
    HW = H * W
    M = params["w11f"].shape[0]
    Cout = params["wfa"].shape[0]

    def _round128(n):
        return ((n + 127) // 128) * 128

    def _halve(t):
        return max(128, ((t // 2) // 128) * 128)

    # Lane-dense pixel tiles (multiple of 128).  No pad / slice in the wrapper:
    # Pallas masks the ragged last tile (pixels are fully independent).
    tile = max(128, min((tile_pixels // 128) * 128, _round128(HW)))

    # VMEM budget (bytes): pair scratch + double-buffered in/out pixel blocks.
    def vmem_estimate(t):
        return 4 * (M * M * t          # pair scratch
                    + 2 * C * t        # input block, double buffered
                    + 2 * Cout * t)    # output block, double buffered
    # Keep well inside every generation's scoped default (v5e 16 MiB, v7x 32 MiB).
    while tile > 512 and vmem_estimate(tile) > 12 * 2**20:
        tile = _halve(tile)
    # Megacore (v7x has 2 TCs): keep several grid steps along the parallel axes.
    while tile > 1024 and B * ((HW + tile - 1) // tile) < 8:
        tile = _halve(tile)

    n_tiles = (HW + tile - 1) // tile
    xp = x0.reshape(B, C, HW)                      # NCHW -> (B, C, HW): pure reshape

    def full2d(a):
        return pl.BlockSpec(a.shape, lambda b, i: (0, 0))

    vmem_limit = int(min(max(4 * vmem_estimate(tile), 16 * 2**20), 48 * 2**20))

    out = pl.pallas_call(
        texture_kernel,
        out_shape=jax.ShapeDtypeStruct((B, Cout, HW), jnp.float32),
        grid_spec=pltpu.PrefetchScalarGridSpec(
            num_scalar_prefetch=0,
            grid=(B, n_tiles),
            in_specs=[
                pl.BlockSpec((1, C, tile), lambda b, i: (b, 0, i)),  # pixels
                full2d(params["w11f"]),                              # (M, Cin), BN1 folded
                full2d(params["b1"]),                                # (M, 1)
                full2d(params["w12f"]),                              # (Cout, M*M), triu+BN2 folded
                full2d(params["b2"]),                                # (Cout, 1)
                full2d(params["wfa"]),                               # (Cout, Cout) texture half
                full2d(params["wfb"]),                               # (Cout, Cin)  skip half
                full2d(params["bfc"]),                               # (Cout, 1)
            ],
            out_specs=pl.BlockSpec((1, Cout, tile), lambda b, i: (b, 0, i)),
            scratch_shapes=[pltpu.VMEM((M * M, tile), jnp.float32)],
        ),
        compiler_params=pltpu.CompilerParams(
            dimension_semantics=("parallel", "parallel"),
            vmem_limit_bytes=vmem_limit),
    )(xp, params["w11f"], params["b1"], params["w12f"], params["b2"],
      params["wfa"], params["wfb"], params["bfc"])

    return out.reshape(B, Cout, H, W)


# --------------------------- parameter building ----------------------------- #
def make_params(key, in_channel, mid_channel):
    out_channel = in_channel
    M = mid_channel
    P = (M - 1) * M // 2
    eps = 1e-5
    k = jax.random.split(key, 12)

    # conv11: Conv2d(in_channel, M, 1, bias=False) -> weight (M, Cin)
    w11 = jax.random.normal(k[0], (M, in_channel), jnp.float32) * 0.3
    # BatchNorm2d(M), eval mode: fold scale into weight, keep bias.
    g1 = 1.0 + 0.2 * jax.random.normal(k[1], (M,), jnp.float32)
    be1 = 0.1 * jax.random.normal(k[2], (M,), jnp.float32)
    mu1 = 0.1 * jax.random.normal(k[3], (M,), jnp.float32)
    var1 = 1.0 + 0.2 * jax.random.uniform(k[4], (M,), jnp.float32)
    s1 = g1 / jnp.sqrt(var1 + eps)
    b1 = be1 - s1 * mu1
    w11f = w11 * s1[:, None]

    # conv12: Conv2d(P, out_channel, 1, bias=False) -> weight (Cout, P)
    w12 = jax.random.normal(k[5], (out_channel, P), jnp.float32) * 0.3
    g2 = 1.0 + 0.2 * jax.random.normal(k[6], (out_channel,), jnp.float32)
    be2 = 0.1 * jax.random.normal(k[7], (out_channel,), jnp.float32)
    mu2 = 0.1 * jax.random.normal(k[8], (out_channel,), jnp.float32)
    var2 = 1.0 + 0.2 * jax.random.uniform(k[9], (out_channel,), jnp.float32)
    s2 = g2 / jnp.sqrt(var2 + eps)
    b2 = be2 - s2 * mu2

    # Scatter the strict-upper-triangle pair weights (torch.triu diag=1,
    # row-major order) into a dense (Cout, M*M) matrix; columns with i >= j
    # stay zero.  BN2 scale folded in.
    w12_np = np.asarray(w12)
    w12f = np.zeros((out_channel, M * M), dtype=np.float32)
    p = 0
    for i in range(M):
        for j in range(i + 1, M):
            w12f[:, i * M + j] = w12_np[:, p]
            p += 1
    w12f = jnp.asarray(w12f) * s2[:, None]

    # fc: Conv2d(2*out_channel, out_channel, 1, bias=True) -> weight (Cout, 2*Cout)
    wfc = jax.random.normal(k[10], (out_channel, 2 * out_channel), jnp.float32) * 0.3
    bfc = jax.random.normal(k[11], (out_channel,), jnp.float32) * 0.1

    return {
        "w11f": w11f,                                  # (M, Cin), BN1 scale folded
        "b1": b1.reshape(M, 1),                        # BN1 bias
        "w12f": w12f,                                  # (Cout, M*M), triu + BN2 scale folded
        "b2": b2.reshape(out_channel, 1),              # BN2 bias
        "wfa": wfc[:, :out_channel],                   # (Cout, Cout), texture branch
        "wfb": wfc[:, out_channel:],                   # (Cout, Cin),  skip branch
        "bfc": bfc.reshape(out_channel, 1),
    }


# --------------------------- pure-JAX reference ------------------------------ #
def texture_reference(x0, params):
    B, C, H, W = x0.shape
    hp = jax.lax.Precision.HIGHEST
    xp = x0.reshape(B, C, H * W)
    y1 = jnp.einsum('mc,bcn->bmn', params["w11f"], xp, precision=hp)
    y1 = jnp.maximum(y1 + params["b1"][None], 0.0)
    y1 = y1 / jnp.maximum(jnp.sum(jnp.abs(y1), axis=1, keepdims=True), 1e-12)
    M = y1.shape[1]
    outer = (y1[:, :, None, :] * y1[:, None, :, :]).reshape(B, M * M, H * W)
    y2 = jnp.einsum('om,bmn->bon', params["w12f"], outer, precision=hp)
    y2 = jnp.maximum(y2 + params["b2"][None], 0.0)
    out = (jnp.einsum('oc,bcn->bon', params["wfa"], y2, precision=hp)
           + jnp.einsum('oc,bcn->bon', params["wfb"], xp, precision=hp)
           + params["bfc"][None])
    return out.reshape(B, -1, H, W)


# ----------------------------------- main ------------------------------------ #
if __name__ == "__main__":
    key = jax.random.PRNGKey(0)
    k_x, k_p = jax.random.split(key)

    B, in_channel, H, W = 2, 4, 16, 16
    mid_channel = 8

    x0 = jax.random.normal(k_x, (B, in_channel, H, W), jnp.float32)
    params = make_params(k_p, in_channel, mid_channel)

    out = jax.block_until_ready(texture_forward(x0, params))
    ref = jax.block_until_ready(texture_reference(x0, params))

    assert out.shape == (B, in_channel, H, W)
    np.testing.assert_allclose(np.asarray(out), np.asarray(ref), rtol=2e-3, atol=2e-3)

    print("KERNEL_OK")
</pallas_src>

<mosaic_0001>
module attributes {stable_mosaic.version = 11 : i64} {
  func.func @texture_kernel(%arg0: i32, %arg1: i32, %arg2: memref<1x4x256xf32, #tpu.memory_space<vmem>>, %arg3: memref<8x4xf32, #tpu.memory_space<vmem>>, %arg4: memref<8x1xf32, #tpu.memory_space<vmem>>, %arg5: memref<4x64xf32, #tpu.memory_space<vmem>>, %arg6: memref<4x1xf32, #tpu.memory_space<vmem>>, %arg7: memref<4x4xf32, #tpu.memory_space<vmem>>, %arg8: memref<4x4xf32, #tpu.memory_space<vmem>>, %arg9: memref<4x1xf32, #tpu.memory_space<vmem>>, %arg10: memref<1x4x256xf32, #tpu.memory_space<vmem>>, %arg11: memref<64x256xf32, #tpu.memory_space<vmem>>) attributes {dimension_semantics = [#tpu.dimension_semantics<parallel>, #tpu.dimension_semantics<parallel>], iteration_bounds = array<i64: 2, 1>, scalar_prefetch = 0 : i64, scratch_operands = 1 : i64, tpu.core_type = #tpu.core_type<tc>, window_params = [{transform_indices = @transform_0, window_bounds = array<i64: 1, 4, 256>}, {pipeline_mode = #tpu.pipeline_mode<synchronous>, transform_indices = @transform_1, window_bounds = array<i64: 8, 4>}, {pipeline_mode = #tpu.pipeline_mode<synchronous>, transform_indices = @transform_2, window_bounds = array<i64: 8, 1>}, {pipeline_mode = #tpu.pipeline_mode<synchronous>, transform_indices = @transform_3, window_bounds = array<i64: 4, 64>}, {pipeline_mode = #tpu.pipeline_mode<synchronous>, transform_indices = @transform_4, window_bounds = array<i64: 4, 1>}, {pipeline_mode = #tpu.pipeline_mode<synchronous>, transform_indices = @transform_5, window_bounds = array<i64: 4, 4>}, {pipeline_mode = #tpu.pipeline_mode<synchronous>, transform_indices = @transform_6, window_bounds = array<i64: 4, 4>}, {pipeline_mode = #tpu.pipeline_mode<synchronous>, transform_indices = @transform_7, window_bounds = array<i64: 4, 1>}, {transform_indices = @transform_8, window_bounds = array<i64: 1, 4, 256>}]} {
    %c0 = arith.constant 0 : index
    %c0_0 = arith.constant 0 : index
    %c0_1 = arith.constant 0 : index
    %0 = vector.load %arg2[%c0, %c0_0, %c0_1] : memref<1x4x256xf32, #tpu.memory_space<vmem>>, vector<1x4x256xf32>
    %1 = vector.shape_cast %0 : vector<1x4x256xf32> to vector<4x256xf32>
    %c0_2 = arith.constant 0 : index
    %c0_3 = arith.constant 0 : index
    %2 = vector.load %arg3[%c0_2, %c0_3] : memref<8x4xf32, #tpu.memory_space<vmem>>, vector<8x4xf32>
    %cst = arith.constant dense<0.000000e+00> : vector<8x256xf32>
    %3 = tpu.matmul %2, %1, %cst {dimension_numbers = #tpu.dot_dimension_numbers<[1], [0], [0], [1], [0, 0, 1, 1], [], []>} : vector<8x4xf32>, vector<4x256xf32>, vector<8x256xf32> -> vector<8x256xf32>
    %c0_4 = arith.constant 0 : index
    %c0_5 = arith.constant 0 : index
    %4 = vector.load %arg4[%c0_4, %c0_5] : memref<8x1xf32, #tpu.memory_space<vmem>>, vector<8x1xf32>
    %5 = vector.broadcast %4 : vector<8x1xf32> to vector<8x256xf32>
    %6 = arith.addf %3, %5 : vector<8x256xf32>
    %cst_6 = arith.constant 0.000000e+00 : f32
    %7 = vector.broadcast %cst_6 : f32 to vector<8x256xf32>
    %8 = arith.maximumf %6, %7 : vector<8x256xf32>
    %9 = math.absf %8 : vector<8x256xf32>
    %cst_7 = arith.constant dense<0.000000e+00> : vector<256xf32>
    %10 = vector.multi_reduction <add>, %9, %cst_7 [0] : vector<8x256xf32> to vector<256xf32>
    %11 = vector.shape_cast %10 : vector<256xf32> to vector<1x256xf32>
    %cst_8 = arith.constant 9.99999996E-13 : f32
    %12 = vector.broadcast %cst_8 : f32 to vector<1x256xf32>
    %13 = arith.maximumf %11, %12 : vector<1x256xf32>
    %14 = vector.broadcast %13 : vector<1x256xf32> to vector<8x256xf32>
    %15 = arith.divf %8, %14 : vector<8x256xf32>
    %16 = vector.extract_strided_slice %15 {offsets = [0, 0], sizes = [1, 256], strides = [1, 1]} : vector<8x256xf32> to vector<1x256xf32>
    %17 = vector.broadcast %16 : vector<1x256xf32> to vector<8x256xf32>
    %18 = arith.mulf %17, %15 : vector<8x256xf32>
    %c0_9 = arith.constant 0 : index
    %c0_10 = arith.constant 0 : index
    %19 = vector.load %arg11[%c0_9, %c0_10] : memref<64x256xf32, #tpu.memory_space<vmem>>, vector<8x256xf32>
    tpu.vector_store %arg11[%c0_9, %c0_10], %18 {strides = array<i32>} : memref<64x256xf32, #tpu.memory_space<vmem>>, vector<8x256xf32>,
    %20 = vector.extract_strided_slice %15 {offsets = [1, 0], sizes = [1, 256], strides = [1, 1]} : vector<8x256xf32> to vector<1x256xf32>
    %21 = vector.broadcast %20 : vector<1x256xf32> to vector<8x256xf32>
    %22 = arith.mulf %21, %15 : vector<8x256xf32>
    %c8 = arith.constant 8 : index
    %c0_11 = arith.constant 0 : index
    %23 = vector.load %arg11[%c8, %c0_11] : memref<64x256xf32, #tpu.memory_space<vmem>>, vector<8x256xf32>
    tpu.vector_store %arg11[%c8, %c0_11], %22 {strides = array<i32>} : memref<64x256xf32, #tpu.memory_space<vmem>>, vector<8x256xf32>,
    %24 = vector.extract_strided_slice %15 {offsets = [2, 0], sizes = [1, 256], strides = [1, 1]} : vector<8x256xf32> to vector<1x256xf32>
    %25 = vector.broadcast %24 : vector<1x256xf32> to vector<8x256xf32>
    %26 = arith.mulf %25, %15 : vector<8x256xf32>
    %c16 = arith.constant 16 : index
    %c0_12 = arith.constant 0 : index
    %27 = vector.load %arg11[%c16, %c0_12] : memref<64x256xf32, #tpu.memory_space<vmem>>, vector<8x256xf32>
    tpu.vector_store %arg11[%c16, %c0_12], %26 {strides = array<i32>} : memref<64x256xf32, #tpu.memory_space<vmem>>, vector<8x256xf32>,
    %28 = vector.extract_strided_slice %15 {offsets = [3, 0], sizes = [1, 256], strides = [1, 1]} : vector<8x256xf32> to vector<1x256xf32>
    %29 = vector.broadcast %28 : vector<1x256xf32> to vector<8x256xf32>
    %30 = arith.mulf %29, %15 : vector<8x256xf32>
    %c24 = arith.constant 24 : index
    %c0_13 = arith.constant 0 : index
    %31 = vector.load %arg11[%c24, %c0_13] : memref<64x256xf32, #tpu.memory_space<vmem>>, vector<8x256xf32>
    tpu.vector_store %arg11[%c24, %c0_13], %30 {strides = array<i32>} : memref<64x256xf32, #tpu.memory_space<vmem>>, vector<8x256xf32>,
    %32 = vector.extract_strided_slice %15 {offsets = [4, 0], sizes = [1, 256], strides = [1, 1]} : vector<8x256xf32> to vector<1x256xf32>
    %33 = vector.broadcast %32 : vector<1x256xf32> to vector<8x256xf32>
    %34 = arith.mulf %33, %15 : vector<8x256xf32>
    %c32 = arith.constant 32 : index
    %c0_14 = arith.constant 0 : index
    %35 = vector.load %arg11[%c32, %c0_14] : memref<64x256xf32, #tpu.memory_space<vmem>>, vector<8x256xf32>
    tpu.vector_store %arg11[%c32, %c0_14], %34 {strides = array<i32>} : memref<64x256xf32, #tpu.memory_space<vmem>>, vector<8x256xf32>,
    %36 = vector.extract_strided_slice %15 {offsets = [5, 0], sizes = [1, 256], strides = [1, 1]} : vector<8x256xf32> to vector<1x256xf32>
    %37 = vector.broadcast %36 : vector<1x256xf32> to vector<8x256xf32>
    %38 = arith.mulf %37, %15 : vector<8x256xf32>
    %c40 = arith.constant 40 : index
    %c0_15 = arith.constant 0 : index
    %39 = vector.load %arg11[%c40, %c0_15] : memref<64x256xf32, #tpu.memory_space<vmem>>, vector<8x256xf32>
    tpu.vector_store %arg11[%c40, %c0_15], %38 {strides = array<i32>} : memref<64x256xf32, #tpu.memory_space<vmem>>, vector<8x256xf32>,
    %40 = vector.extract_strided_slice %15 {offsets = [6, 0], sizes = [1, 256], strides = [1, 1]} : vector<8x256xf32> to vector<1x256xf32>
    %41 = vector.broadcast %40 : vector<1x256xf32> to vector<8x256xf32>
    %42 = arith.mulf %41, %15 : vector<8x256xf32>
    %c48 = arith.constant 48 : index
    %c0_16 = arith.constant 0 : index
    %43 = vector.load %arg11[%c48, %c0_16] : memref<64x256xf32, #tpu.memory_space<vmem>>, vector<8x256xf32>
    tpu.vector_store %arg11[%c48, %c0_16], %42 {strides = array<i32>} : memref<64x256xf32, #tpu.memory_space<vmem>>, vector<8x256xf32>,
    %44 = vector.extract_strided_slice %15 {offsets = [7, 0], sizes = [1, 256], strides = [1, 1]} : vector<8x256xf32> to vector<1x256xf32>
    %45 = vector.broadcast %44 : vector<1x256xf32> to vector<8x256xf32>
    %46 = arith.mulf %45, %15 : vector<8x256xf32>
    %c56 = arith.constant 56 : index
    %c0_17 = arith.constant 0 : index
    %47 = vector.load %arg11[%c56, %c0_17] : memref<64x256xf32, #tpu.memory_space<vmem>>, vector<8x256xf32>
    tpu.vector_store %arg11[%c56, %c0_17], %46 {strides = array<i32>} : memref<64x256xf32, #tpu.memory_space<vmem>>, vector<8x256xf32>,
    %c0_18 = arith.constant 0 : index
    %c0_19 = arith.constant 0 : index
    %48 = vector.load %arg5[%c0_18, %c0_19] : memref<4x64xf32, #tpu.memory_space<vmem>>, vector<4x64xf32>
    %c0_20 = arith.constant 0 : index
    %c0_21 = arith.constant 0 : index
    %49 = vector.load %arg11[%c0_20, %c0_21] : memref<64x256xf32, #tpu.memory_space<vmem>>, vector<64x256xf32>
    %cst_22 = arith.constant dense<0.000000e+00> : vector<4x256xf32>
    %50 = tpu.matmul %48, %49, %cst_22 {dimension_numbers = #tpu.dot_dimension_numbers<[1], [0], [0], [1], [0, 0, 1, 1], [], []>} : vector<4x64xf32>, vector<64x256xf32>, vector<4x256xf32> -> vector<4x256xf32>
    %c0_23 = arith.constant 0 : index
    %c0_24 = arith.constant 0 : index
    %51 = vector.load %arg6[%c0_23, %c0_24] : memref<4x1xf32, #tpu.memory_space<vmem>>, vector<4x1xf32>
    %52 = vector.broadcast %51 : vector<4x1xf32> to vector<4x256xf32>
    %53 = arith.addf %50, %52 : vector<4x256xf32>
    %cst_25 = arith.constant 0.000000e+00 : f32
    %54 = vector.broadcast %cst_25 : f32 to vector<4x256xf32>
    %55 = arith.maximumf %53, %54 : vector<4x256xf32>
    %c0_26 = arith.constant 0 : index
    %c0_27 = arith.constant 0 : index
    %56 = vector.load %arg7[%c0_26, %c0_27] : memref<4x4xf32, #tpu.memory_space<vmem>>, vector<4x4xf32>
    %cst_28 = arith.constant dense<0.000000e+00> : vector<4x256xf32>
    %57 = tpu.matmul %56, %55, %cst_28 {dimension_numbers = #tpu.dot_dimension_numbers<[1], [0], [0], [1], [0, 0, 1, 1], [], []>} : vector<4x4xf32>, vector<4x256xf32>, vector<4x256xf32> -> vector<4x256xf32>
    %c0_29 = arith.constant 0 : index
    %c0_30 = arith.constant 0 : index
    %58 = vector.load %arg8[%c0_29, %c0_30] : memref<4x4xf32, #tpu.memory_space<vmem>>, vector<4x4xf32>
    %cst_31 = arith.constant dense<0.000000e+00> : vector<4x256xf32>
    %59 = tpu.matmul %58, %1, %cst_31 {dimension_numbers = #tpu.dot_dimension_numbers<[1], [0], [0], [1], [0, 0, 1, 1], [], []>} : vector<4x4xf32>, vector<4x256xf32>, vector<4x256xf32> -> vector<4x256xf32>
    %60 = arith.addf %57, %59 : vector<4x256xf32>
    %c0_32 = arith.constant 0 : index
    %c0_33 = arith.constant 0 : index
    %61 = vector.load %arg9[%c0_32, %c0_33] : memref<4x1xf32, #tpu.memory_space<vmem>>, vector<4x1xf32>
    %62 = vector.broadcast %61 : vector<4x1xf32> to vector<4x256xf32>
    %63 = arith.addf %60, %62 : vector<4x256xf32>
    %c0_34 = arith.constant 0 : index
    %c0_35 = arith.constant 0 : index
    %c0_36 = arith.constant 0 : index
    %64 = vector.load %arg10[%c0_34, %c0_35, %c0_36] : memref<1x4x256xf32, #tpu.memory_space<vmem>>, vector<1x4x256xf32>
    %65 = vector.shape_cast %64 : vector<1x4x256xf32> to vector<4x256xf32>
    %66 = vector.shape_cast %63 : vector<4x256xf32> to vector<1x4x256xf32>
    tpu.vector_store %arg10[%c0_34, %c0_35, %c0_36], %66 {strides = array<i32>} : memref<1x4x256xf32, #tpu.memory_space<vmem>>, vector<1x4x256xf32>,
    return
  }
  func.func @transform_0(%arg0: i32, %arg1: i32) -> (i32, i32, i32) {
    %c0_i32 = arith.constant 0 : i32
    %c0_i32_0 = arith.constant 0 : i32
    return %arg0, %c0_i32, %arg1 : i32, i32, i32
  }
  func.func @transform_1(%arg0: i32, %arg1: i32) -> (i32, i32) {
    %c0_i32 = arith.constant 0 : i32
    %c0_i32_0 = arith.constant 0 : i32
    %c0_i32_1 = arith.constant 0 : i32
    return %c0_i32, %c0_i32_0 : i32, i32
  }
  func.func @transform_2(%arg0: i32, %arg1: i32) -> (i32, i32) {
    %c0_i32 = arith.constant 0 : i32
    %c0_i32_0 = arith.constant 0 : i32
    %c0_i32_1 = arith.constant 0 : i32
    return %c0_i32, %c0_i32_0 : i32, i32
  }
  func.func @transform_3(%arg0: i32, %arg1: i32) -> (i32, i32) {
    %c0_i32 = arith.constant 0 : i32
    %c0_i32_0 = arith.constant 0 : i32
    %c0_i32_1 = arith.constant 0 : i32
    return %c0_i32, %c0_i32_0 : i32, i32
  }
  func.func @transform_4(%arg0: i32, %arg1: i32) -> (i32, i32) {
    %c0_i32 = arith.constant 0 : i32
    %c0_i32_0 = arith.constant 0 : i32
    %c0_i32_1 = arith.constant 0 : i32
    return %c0_i32, %c0_i32_0 : i32, i32
  }
  func.func @transform_5(%arg0: i32, %arg1: i32) -> (i32, i32) {
    %c0_i32 = arith.constant 0 : i32
    %c0_i32_0 = arith.constant 0 : i32
    %c0_i32_1 = arith.constant 0 : i32
    return %c0_i32, %c0_i32_0 : i32, i32
  }
  func.func @transform_6(%arg0: i32, %arg1: i32) -> (i32, i32) {
    %c0_i32 = arith.constant 0 : i32
    %c0_i32_0 = arith.constant 0 : i32
    %c0_i32_1 = arith.constant 0 : i32
    return %c0_i32, %c0_i32_0 : i32, i32
  }
  func.func @transform_7(%arg0: i32, %arg1: i32) -> (i32, i32) {
    %c0_i32 = arith.constant 0 : i32
    %c0_i32_0 = arith.constant 0 : i32
    %c0_i32_1 = arith.constant 0 : i32
    return %c0_i32, %c0_i32_0 : i32, i32
  }
  func.func @transform_8(%arg0: i32, %arg1: i32) -> (i32, i32, i32) {
    %c0_i32 = arith.constant 0 : i32
    %c0_i32_0 = arith.constant 0 : i32
    return %arg0, %c0_i32, %arg1 : i32, i32, i32
  }
}

</mosaic_0001>

<llo_original>
// kernel: tpu_custom_call.1
$region0: #{tpu_custom_call.1}
  #allocation0 [shape = 'u32[]', space=smem, size = 0x4, offset = 0x4, fixed_abs, tag = 'smem constant byte address 0x4 - core index']
  #allocation1 [shape = 'u32[144,128]{1,0:T(1,128)}', space=vmem, size = 0x12000, scoped, tag = 'internal scratch']
  #allocation2 [shape = 'f32[64,256]{1,0:T(8,128)}', space=vmem, size = 0x10000, scoped, tag = 'scratch operand']
  %s0 = inlined_call_operand.vmem [shape: f32[2,4,256], index: 0, kind: input, shape index: {}]
  %s1 = inlined_call_operand.vmem [shape: f32[8,4], index: 1, kind: input, shape index: {}]
  %s2 = inlined_call_operand.vmem [shape: f32[8,1], index: 2, kind: input, shape index: {}]
  %s3 = inlined_call_operand.vmem [shape: f32[4,64], index: 3, kind: input, shape index: {}]
  %s4 = inlined_call_operand.vmem [shape: f32[4,1], index: 4, kind: input, shape index: {}]
  %s5 = inlined_call_operand.vmem [shape: f32[4,4], index: 5, kind: input, shape index: {}]
  %s6 = inlined_call_operand.vmem [shape: f32[4,4], index: 6, kind: input, shape index: {}]
  %s7 = inlined_call_operand.vmem [shape: f32[4,1], index: 7, kind: input, shape index: {}]
  %s8 = inlined_call_operand.hbm [shape: f32[2,4,256], index: 8, kind: output, shape index: {}]
  %s9 = sld [smem:[#allocation0]]
  $region65: #{tpu_custom_call.1} parent=0
    _
  %s11 = ssub.s32 1, %s9
  %s12 = scalar_select 0, %s11, %s9
  $region1: #{tpu_custom_call.1} parent=0
    #allocation3 [shape = 'u8[8192]{0}', space=vmem, size = 0x2000, scoped, tag = 'output window, operand 0']
    #allocation4 [shape = 's32[2]{0}', space=sflag, size = 0x8, scoped, tag = 'scoped memory for tpu_custom_call.1']
    %13 = vsyncpa [#allocation4], 0
    %s14 = scalar_lea.sflag [#allocation4], 1
    %15 = vsyncpa %s14, 0
    loop: start=0, step=1, limit=4
    $region2: #{tpu_custom_call.1} parent=1 // loop_pre_header
      _
    $region3: #{tpu_custom_call.1} parent=1 // loop_header
      %s17 = sphi 0, %s21
      %p18 = scmp.ge.s32.totalorder %s17, 4
      %s24 = sphi 0, %s36
      %s25 = sphi 0, %s32
      %s26 = sphi 0, %s24
      %s27 = sphi 0, %s25
      %s28 = sphi 0, %s26
      %s29 = sphi 0, %s27
      %s41 = sphi 0, %s43
      %s44 = sphi 0, %s41
      %s45 = sphi 0, %s44
      %s61 = sphi 0, %s45
      %s65 = sphi 0, %s65
      %s67 = sphi 0, %s65
      %s68 = sphi 0, %s67
      %s82 = sphi 0, %s68
      %s86 = sphi 0, %s86
      %s88 = sphi 0, %s86
      %s89 = sphi 0, %s88
      %s103 = sphi 0, %s89
      %s107 = sphi 0, %s107
      %s109 = sphi 0, %s107
      %s110 = sphi 0, %s109
      %s124 = sphi 0, %s110
      %s128 = sphi 0, %s128
      %s130 = sphi 0, %s128
      %s131 = sphi 0, %s130
      %s145 = sphi 0, %s131
      %s149 = sphi 0, %s149
      %s151 = sphi 0, %s149
      %s152 = sphi 0, %s151
      %s166 = sphi 0, %s152
      %s170 = sphi 0, %s170
      %s172 = sphi 0, %s170
      %s173 = sphi 0, %s172
      %s187 = sphi 0, %s173
      %s191 = sphi 0, %s191
      %s193 = sphi 0, %s191
      %s194 = sphi 0, %s193
      %s208 = sphi 0, %s194
      %s216 = sphi 0, %s218
      %s219 = sphi 0, %s216
      %s220 = sphi 0, %s219
      %s236 = sphi 0, %s220
    $region4: #{tpu_custom_call.1} parent=1 // loop_header_branch
      %20 = sbr.rel (%p18) target = $region8
    $region5: #{tpu_custom_call.1} parent=1 // loop_body
      %s22 = ssub.s32 %s17, 1
      %s23 = ssub.s32 %s17, 2
      %s30 = sadd.s32 1, %s25
      %p31 = scmp.ge.s32.totalorder %s30, 1
      %s32 = scalar_select %p31, 0, %s30
      %s33 = sadd.s32 1, %s24
      %s34 = scalar_select %p31, %s33, %s24
      %p35 = scmp.ge.s32.totalorder %s34, 2
      %s36 = scalar_select %p35, 0, %s34
      %s37 = ssub.s32 %s24, %s36
      %s38 = ssub.s32 %s25, %s32
      %s39 = sor.u32 %s37, %s38
      %p40 = scmp.eq.s32.totalorder %s39, 0
      %s42 = sadd.s32 %s41, 1
      %s43 = scalar_select %p40, %s41, %s42
      %p46 = pneg %p40
      %p47 = scmp.eq.s32.totalorder %s17, 1
      %p48 = por %p46, %p47
      %p49 = scmp.ne.s32.totalorder %s41, %s44
      %p50 = scmp.eq.s32.totalorder %s17, 0
      %p51 = por %p49, %p50
      %p52 = scmp.ne.s32.totalorder %s41, %s44
      %p53 = scmp.eq.s32.totalorder %s22, 1
      %p54 = por %p52, %p53
      %p55 = scmp.ne.s32.totalorder %s44, %s45
      %p56 = scmp.eq.s32.totalorder %s22, 0
      %p57 = por %p55, %p56
      %p58 = scmp.ne.s32.totalorder %s44, %s45
      %p59 = scmp.eq.s32.totalorder %s23, 1
      %p60 = por %p58, %p59
      %p62 = scmp.ne.s32.totalorder %s45, %s61
      %p63 = scmp.eq.s32.totalorder %s23, 0
      %p64 = por %p62, %p63
      %s66 = sadd.s32 %s65, 1
      %p69 = scmp.eq.s32.totalorder %s17, 1
      %p70 = scmp.ne.s32.totalorder %s65, %s67
      %p71 = scmp.eq.s32.totalorder %s17, 0
      %p72 = por %p70, %p71
      %p73 = scmp.ne.s32.totalorder %s65, %s67
      %p74 = scmp.eq.s32.totalorder %s22, 1
      %p75 = por %p73, %p74
      %p76 = scmp.ne.s32.totalorder %s67, %s68
      %p77 = scmp.eq.s32.totalorder %s22, 0
      %p78 = por %p76, %p77
      %p79 = scmp.ne.s32.totalorder %s67, %s68
      %p80 = scmp.eq.s32.totalorder %s23, 1
      %p81 = por %p79, %p80
      %p83 = scmp.ne.s32.totalorder %s68, %s82
      %p84 = scmp.eq.s32.totalorder %s23, 0
      %p85 = por %p83, %p84
      %s87 = sadd.s32 %s86, 1
      %p90 = scmp.eq.s32.totalorder %s17, 1
      %p91 = scmp.ne.s32.totalorder %s86, %s88
      %p92 = scmp.eq.s32.totalorder %s17, 0
      %p93 = por %p91, %p92
      %p94 = scmp.ne.s32.totalorder %s86, %s88
      %p95 = scmp.eq.s32.totalorder %s22, 1
      %p96 = por %p94, %p95
      %p97 = scmp.ne.s32.totalorder %s88, %s89
      %p98 = scmp.eq.s32.totalorder %s22, 0
      %p99 = por %p97, %p98
      %p100 = scmp.ne.s32.totalorder %s88, %s89
      %p101 = scmp.eq.s32.totalorder %s23, 1
      %p102 = por %p100, %p101
      %p104 = scmp.ne.s32.totalorder %s89, %s103
      %p105 = scmp.eq.s32.totalorder %s23, 0
      %p106 = por %p104, %p105
      %s108 = sadd.s32 %s107, 1
      %p111 = scmp.eq.s32.totalorder %s17, 1
      %p112 = scmp.ne.s32.totalorder %s107, %s109
      %p113 = scmp.eq.s32.totalorder %s17, 0
      %p114 = por %p112, %p113
      %p115 = scmp.ne.s32.totalorder %s107, %s109
      %p116 = scmp.eq.s32.totalorder %s22, 1
      %p117 = por %p115, %p116
      %p118 = scmp.ne.s32.totalorder %s109, %s110
      %p119 = scmp.eq.s32.totalorder %s22, 0
      %p120 = por %p118, %p119
      %p121 = scmp.ne.s32.totalorder %s109, %s110
      %p122 = scmp.eq.s32.totalorder %s23, 1
      %p123 = por %p121, %p122
      %p125 = scmp.ne.s32.totalorder %s110, %s124
      %p126 = scmp.eq.s32.totalorder %s23, 0
      %p127 = por %p125, %p126
      %s129 = sadd.s32 %s128, 1
      %p132 = scmp.eq.s32.totalorder %s17, 1
      %p133 = scmp.ne.s32.totalorder %s128, %s130
      %p134 = scmp.eq.s32.totalorder %s17, 0
      %p135 = por %p133, %p134
      %p136 = scmp.ne.s32.totalorder %s128, %s130
      %p137 = scmp.eq.s32.totalorder %s22, 1
      %p138 = por %p136, %p137
      %p139 = scmp.ne.s32.totalorder %s130, %s131
      %p140 = scmp.eq.s32.totalorder %s22, 0
      %p141 = por %p139, %p140
      %p142 = scmp.ne.s32.totalorder %s130, %s131
      %p143 = scmp.eq.s32.totalorder %s23, 1
      %p144 = por %p142, %p143
      %p146 = scmp.ne.s32.totalorder %s131, %s145
      %p147 = scmp.eq.s32.totalorder %s23, 0
      %p148 = por %p146, %p147
      %s150 = sadd.s32 %s149, 1
      %p153 = scmp.eq.s32.totalorder %s17, 1
      %p154 = scmp.ne.s32.totalorder %s149, %s151
      %p155 = scmp.eq.s32.totalorder %s17, 0
      %p156 = por %p154, %p155
      %p157 = scmp.ne.s32.totalorder %s149, %s151
      %p158 = scmp.eq.s32.totalorder %s22, 1
      %p159 = por %p157, %p158
      %p160 = scmp.ne.s32.totalorder %s151, %s152
      %p161 = scmp.eq.s32.totalorder %s22, 0
      %p162 = por %p160, %p161
      %p163 = scmp.ne.s32.totalorder %s151, %s152
      %p164 = scmp.eq.s32.totalorder %s23, 1
      %p165 = por %p163, %p164
      %p167 = scmp.ne.s32.totalorder %s152, %s166
      %p168 = scmp.eq.s32.totalorder %s23, 0
      %p169 = por %p167, %p168
      %s171 = sadd.s32 %s170, 1
      %p174 = scmp.eq.s32.totalorder %s17, 1
      %p175 = scmp.ne.s32.totalorder %s170, %s172
      %p176 = scmp.eq.s32.totalorder %s17, 0
      %p177 = por %p175, %p176
      %p178 = scmp.ne.s32.totalorder %s170, %s172
      %p179 = scmp.eq.s32.totalorder %s22, 1
      %p180 = por %p178, %p179
      %p181 = scmp.ne.s32.totalorder %s172, %s173
      %p182 = scmp.eq.s32.totalorder %s22, 0
      %p183 = por %p181, %p182
      %p184 = scmp.ne.s32.totalorder %s172, %s173
      %p185 = scmp.eq.s32.totalorder %s23, 1
      %p186 = por %p184, %p185
      %p188 = scmp.ne.s32.totalorder %s173, %s187
      %p189 = scmp.eq.s32.totalorder %s23, 0
      %p190 = por %p188, %p189
      %s192 = sadd.s32 %s191, 1
      %p195 = scmp.eq.s32.totalorder %s17, 1
      %p196 = scmp.ne.s32.totalorder %s191, %s193
      %p197 = scmp.eq.s32.totalorder %s17, 0
      %p198 = por %p196, %p197
      %p199 = scmp.ne.s32.totalorder %s191, %s193
      %p200 = scmp.eq.s32.totalorder %s22, 1
      %p201 = por %p199, %p200
      %p202 = scmp.ne.s32.totalorder %s193, %s194
      %p203 = scmp.eq.s32.totalorder %s22, 0
      %p204 = por %p202, %p203
      %p205 = scmp.ne.s32.totalorder %s193, %s194
      %p206 = scmp.eq.s32.totalorder %s23, 1
      %p207 = por %p205, %p206
      %p209 = scmp.ne.s32.totalorder %s194, %s208
      %p210 = scmp.eq.s32.totalorder %s23, 0
      %p211 = por %p209, %p210
      %s212 = ssub.s32 %s24, %s36
      %s213 = ssub.s32 %s25, %s32
      %s214 = sor.u32 %s212, %s213
      %p215 = scmp.eq.s32.totalorder %s214, 0
      %s217 = sadd.s32 %s216, 1
      %s218 = scalar_select %p215, %s216, %s217
      %p221 = pneg %p215
      %p222 = scmp.eq.s32.totalorder %s17, 1
      %p223 = por %p221, %p222
      %p224 = scmp.ne.s32.totalorder %s216, %s219
      %p225 = scmp.eq.s32.totalorder %s17, 0
      %p226 = por %p224, %p225
      %p227 = scmp.ne.s32.totalorder %s216, %s219
      %p228 = scmp.eq.s32.totalorder %s22, 1
      %p229 = por %p227, %p228
      %p230 = scmp.ne.s32.totalorder %s219, %s220
      %p231 = scmp.eq.s32.totalorder %s22, 0
      %p232 = por %p230, %p231
      %p233 = scmp.ne.s32.totalorder %s219, %s220
      %p234 = scmp.eq.s32.totalorder %s23, 1
      %p235 = por %p233, %p234
      %p237 = scmp.ne.s32.totalorder %s220, %s236
      %p238 = scmp.eq.s32.totalorder %s23, 0
      %p239 = por %p237, %p238
      %p240 = scmp.le.s32.totalorder 1, %s17
      %p241 = scmp.lt.s32.totalorder %s17, 3
      %p242 = pnand %p240, %p241
      %p243 = pneg %p242
      // Predicated region
      $region9: #{tpu_custom_call.1} parent=5 // pred_check
        _
      $region10: #{tpu_custom_call.1} parent=5 // pred_check_branch
        %245 = sbr.rel (%p242) target = $region12
      $region11: #{tpu_custom_call.1} parent=5 // pred_region
        %s246 = ssub.s32 %s17, 1
        // Predicated region
        $region13: #{tpu_custom_call.1} parent=11 // pred_check
          %p247 = pneg %p78
        $region14: #{tpu_custom_call.1} parent=11 // pred_check_branch
          %249 = sbr.rel (%p247) target = $region16
        $region15: #{tpu_custom_call.1} parent=11 // pred_region
          _
        $region16: #{tpu_custom_call.1} parent=11 // pred_fallthru
          _
        // Predicated region
        $region17: #{tpu_custom_call.1} parent=11 // pred_check
          %p250 = pneg %p99
        $region18: #{tpu_custom_call.1} parent=11 // pred_check_branch
          %252 = sbr.rel (%p250) target = $region20
        $region19: #{tpu_custom_call.1} parent=11 // pred_region
          _
        $region20: #{tpu_custom_call.1} parent=11 // pred_fallthru
          _
        // Predicated region
        $region21: #{tpu_custom_call.1} parent=11 // pred_check
          %p253 = pneg %p120
        $region22: #{tpu_custom_call.1} parent=11 // pred_check_branch
          %255 = sbr.rel (%p253) target = $region24
        $region23: #{tpu_custom_call.1} parent=11 // pred_region
          _
        $region24: #{tpu_custom_call.1} parent=11 // pred_fallthru
          _
        // Predicated region
        $region25: #{tpu_custom_call.1} parent=11 // pred_check
          %p256 = pneg %p141
        $region26: #{tpu_custom_call.1} parent=11 // pred_check_branch
          %258 = sbr.rel (%p256) target = $region28
        $region27: #{tpu_custom_call.1} parent=11 // pred_region
          _
        $region28: #{tpu_custom_call.1} parent=11 // pred_fallthru
          _
        // Predicated region
        $region29: #{tpu_custom_call.1} parent=11 // pred_check
          %p259 = pneg %p162
        $region30: #{tpu_custom_call.1} parent=11 // pred_check_branch
          %261 = sbr.rel (%p259) target = $region32
        $region31: #{tpu_custom_call.1} parent=11 // pred_region
          _
        $region32: #{tpu_custom_call.1} parent=11 // pred_fallthru
          _
        // Predicated region
        $region33: #{tpu_custom_call.1} parent=11 // pred_check
          %p262 = pneg %p183
        $region34: #{tpu_custom_call.1} parent=11 // pred_check_branch
          %264 = sbr.rel (%p262) target = $region36
        $region35: #{tpu_custom_call.1} parent=11 // pred_region
          _
        $region36: #{tpu_custom_call.1} parent=11 // pred_fallthru
          _
        // Predicated region
        $region37: #{tpu_custom_call.1} parent=11 // pred_check
          %p265 = pneg %p204
        $region38: #{tpu_custom_call.1} parent=11 // pred_check_branch
          %267 = sbr.rel (%p265) target = $region40
        $region39: #{tpu_custom_call.1} parent=11 // pred_region
          _
        $region40: #{tpu_custom_call.1} parent=11 // pred_fallthru
          _
      $region12: #{tpu_custom_call.1} parent=5 // pred_fallthru
        _
      %p268 = scmp.lt.s32.totalorder %s17, 2
      // Predicated region
      $region41: #{tpu_custom_call.1} parent=5 // pred_check
        %p269 = pneg %p268
      $region42: #{tpu_custom_call.1} parent=5 // pred_check_branch
        %271 = sbr.rel (%p269) target = $region44
      $region43: #{tpu_custom_call.1} parent=5 // pred_region
        // Predicated region
        $region45: #{tpu_custom_call.1} parent=43 // pred_check
          %p272 = pneg %p51
        $region46: #{tpu_custom_call.1} parent=43 // pred_check_branch
          %274 = sbr.rel (%p272) target = $region48
        $region47: #{tpu_custom_call.1} parent=43 // pred_region
          %s275 = smul.u32 2, %s25
          %p276 = scmp.lt.s32.totalorder %s24, 1
          %s277 = scalar_select %p276, %s24, 1
          %p278 = scmp.lt.s32.totalorder %s275, 1
          %s279 = scalar_select %p278, %s275, 1
          %s280 = smul.addr %s277, 2
          %s281 = sadd.s32 %s279, %s280
          %s282 = smul.addr %s281, 4
          %s283 = scalar_lea.vmem %s0, %s282
          %s284 = smul.u32 2, %s25
        $region48: #{tpu_custom_call.1} parent=43 // pred_fallthru
          _
      $region44: #{tpu_custom_call.1} parent=5 // pred_fallthru
        _
      %p285 = scmp.le.s32.totalorder 1, %s17
      %p286 = scmp.lt.s32.totalorder %s17, 3
      %p287 = pnand %p285, %p286
      %p288 = pneg %p287
      // Predicated region
      $region49: #{tpu_custom_call.1} parent=5 // pred_check
        _
      $region50: #{tpu_custom_call.1} parent=5 // pred_check_branch
        %290 = sbr.rel (%p287) target = $region52
      $region51: #{tpu_custom_call.1} parent=5 // pred_region
        %s291 = ssub.s32 %s17, 1
        %s292 = smul.u32 2, %s27
        %p293 = scmp.lt.s32.totalorder %s26, 1
        %s294 = scalar_select %p293, %s26, 1
        %p295 = scmp.lt.s32.totalorder %s292, 1
        %s296 = scalar_select %p295, %s292, 1
        %s297 = smul.addr %s294, 2
        %s298 = sadd.s32 %s296, %s297
        %s299 = smul.addr %s298, 4
        %s300 = scalar_lea.vmem %s0, %s299
        %p301 = pneg %p57
        %p302 = pneg %p54
        %p303 = pneg %p78
        %p304 = pneg %p75
        %p305 = pneg %p99
        %p306 = pneg %p96
        %p307 = pneg %p120
        %p308 = pneg %p117
        %p309 = pneg %p141
        %p310 = pneg %p138
        %p311 = pneg %p162
        %p312 = pneg %p159
        %p313 = pneg %p183
        %p314 = pneg %p180
        %p315 = pneg %p204
        %p316 = pneg %p201
        %p317 = pneg %p232
        %p318 = pneg %p229
        %s319 = sand.u32 %s219, 1
        %s320 = scalar_lea.sflag [#allocation4], %s319
        %s321 = sand.u32 %s219, 1
        %s322 = smul.addr %s321, 8
        %s323 = scalar_lea.vmem [#allocation3], %s322
        %s324 = smul.u32 2, %s27
        %p325 = scmp.lt.s32.totalorder %s26, 1
        %s326 = scalar_select %p325, %s26, 1
        %p327 = scmp.lt.s32.totalorder %s324, 1
        %s328 = scalar_select %p327, %s324, 1
        %s329 = smul.addr %s326, 2
        %s330 = sadd.s32 %s328, %s329
        %s331 = smul.addr %s330, 4
        %s332 = scalar_lea.vmem %s0, %s331
        %s333 = smul.u32 2, %s27
        %s334 = smul.u32 2, %s27
        %v335 = vld [vmem:[%s332] sm:$0xff]
        %v336 = vld [vmem:[%s1] sm:$0xff]
        %v337 = vld [vmem:[%s2] sm:$0xff]
        %339 = vset.pattern.permute.xlu0 0
        %340 = vperm.xlu0 %339, %v337
        %v341 = vpop.permute.xlu0 %340
        %v344 = vcombine.high %v335, %v335
        %vm345 = vcmask 31744
        %v347 = vsel %vm345, %v336, 0
        %vm349 = vcmask 1043456
        %v350 = vsel %vm349, %v335, 0
        %v352 = vsel %vm349, %v344, 0
        %354 = vmatprep.subr.mxu0 %v352
        %355 = vmatpush1.msra.mxu0 %v350
        %356 = vmatprep.subr.mxu0 0.0
        %357 = vmatpush1.msra.mxu0 0.0
        %358 = vmatprep.subr.mxu0 0.0
        %359 = vmatpush1.msra.mxu0 0.0
        %360 = vmatprep.subr.mxu0 0.0
        %361 = vmatpush1.msra.mxu0 0.0
        %362 = vmatprep.subr.mxu0 0.0
        %363 = vmatpush1.msra.mxu0 0.0
        %364 = vmatprep.subr.mxu0 0.0
        %365 = vmatpush1.msra.mxu0 0.0
        %366 = vmatprep.subr.mxu0 0.0
        %367 = vmatpush1.msra.mxu0 0.0
        %368 = vmatprep.subr.mxu0 0.0
        %369 = vmatpush1.msra.mxu0 0.0
        %370 = vmatprep.subr.mxu0 0.0
        %371 = vmatpush1.msra.mxu0 0.0
        %372 = vmatprep.subr.mxu0 0.0
        %373 = vmatpush1.msra.mxu0 0.0
        %374 = vmatprep.subr.mxu0 0.0
        %375 = vmatpush1.msra.mxu0 0.0
        %376 = vmatprep.subr.mxu0 0.0
        %377 = vmatpush1.msra.mxu0 0.0
        %378 = vmatprep.subr.mxu0 0.0
        %379 = vmatpush1.msra.mxu0 0.0
        %380 = vmatprep.subr.mxu0 0.0
        %381 = vmatpush1.msra.mxu0 0.0
        %382 = vmatprep.subr.mxu0 0.0
        %383 = vmatpush1.msra.mxu0 0.0
        %384 = vmatprep.subr.mxu0 0.0
        %385 = vmatpush1.msra.mxu0 0.0
        %386 = vmatprep.subr.mxu0 0.0
        %387 = vmatpush1.msra.mxu0 0.0
        %388 = vmatprep.subr.mxu0 0.0
        %389 = vmatpush1.msra.mxu0 0.0
        %390 = vmatprep.subr.mxu0 0.0
        %391 = vmatpush1.msra.mxu0 0.0
        %392 = vmatprep.subr.mxu0 0.0
        %393 = vmatpush1.msra.mxu0 0.0
        %394 = vmatprep.subr.mxu0 0.0
        %395 = vmatpush1.msra.mxu0 0.0
        %396 = vmatprep.subr.mxu0 0.0
        %397 = vmatpush1.msra.mxu0 0.0
        %398 = vmatprep.subr.mxu0 0.0
        %399 = vmatpush1.msra.mxu0 0.0
        %400 = vmatprep.subr.mxu0 0.0
        %401 = vmatpush1.msra.mxu0 0.0
        %402 = vmatprep.subr.mxu0 0.0
        %403 = vmatpush1.msra.mxu0 0.0
        %404 = vmatprep.subr.mxu0 0.0
        %405 = vmatpush1.msra.mxu0 0.0
        %406 = vmatprep.subr.mxu0 0.0
        %407 = vmatpush1.msra.mxu0 0.0
        %408 = vmatprep.subr.mxu0 0.0
        %409 = vmatpush1.msra.mxu0 0.0
        %410 = vmatprep.subr.mxu0 0.0
        %411 = vmatpush1.msra.mxu0 0.0
        %412 = vmatprep.subr.mxu0 0.0
        %413 = vmatpush1.msra.mxu0 0.0
        %414 = vmatprep.subr.mxu0 0.0
        %415 = vmatpush1.msra.mxu0 0.0
        %416 = vmatprep.subr.mxu0 0.0
        %417 = vmatpush1.msra.mxu0 0.0
        %418 = vmatprep.mubr.f32.mxu0 0.0
        %419 = vmatmul.mubr.f32.gmra.mrb[0].mxu0 %v347
        %v420 = vpop.f32.mrb[0].mxu0
        %v421 = vadd.f32 %v341, %v420
        %v422 = vpop.f32.mrb[0].mxu0
        %v423 = vadd.f32 %v341, %v422
        %424 = vdwg.mxu0
        %v425 = vmax.f32 %v421, 0.0
        %v426 = vmax.f32 %v423, 0.0
        %v427 = vand.u32 2147483647, %v425
        %v428 = vand.u32 2147483647, %v426
        %v429 = vrot.slane %v427, 4
        %v430 = vadd.f32 %v427, %v429
        %v431 = vrot.slane %v430, 2
        %v432 = vadd.f32 %v430, %v431
        %v433 = vrot.slane %v432, 1
        %v434 = vadd.f32 %v432, %v433
        %v435 = vrot.slane %v428, 4
        %v436 = vadd.f32 %v428, %v435
        %v437 = vrot.slane %v436, 2
        %v438 = vadd.f32 %v436, %v437
        %v439 = vrot.slane %v438, 1
        %v440 = vadd.f32 %v438, %v439
        %v441 = vmax.f32 %v434, 1e-12
        %v442 = vmax.f32 %v440, 1e-12
        %v443 = vrcp.pop %v441
        %v444 = vmul.f32 %v425, %v443
        %v445 = vrcp.pop %v442
        %v446 = vmul.f32 %v426, %v445
        %v447 = vlaneseq
        %v448 = vshrl.u32 %v447, 7
        %v449 = vsub.s32 0, %v448
        %v450 = vrot.slane %v444, %v449
        %v451 = vlaneseq
        %v452 = vshrl.u32 %v451, 7
        %v453 = vsub.s32 0, %v452
        %v454 = vrot.slane %v446, %v453
        %v455 = vmul.f32 %v450, %v444
        %v456 = vmul.f32 %v454, %v446
        %457 = vst [vmem:[#allocation2] sm:$0xff] %v455
        %458 = vst [vmem:[#allocation2 + $0x8] sm:$0xff] %v456
        %v459 = vlaneseq
        %v460 = vshrl.u32 %v459, 7
        %v461 = vsub.s32 1, %v460
        %v462 = vrot.slane %v444, %v461
        %v463 = vlaneseq
        %v464 = vshrl.u32 %v463, 7
        %v465 = vsub.s32 1, %v464
        %v466 = vrot.slane %v446, %v465
        %v467 = vmul.f32 %v462, %v444
        %v468 = vmul.f32 %v466, %v446
        %469 = vst [vmem:[#allocation2 + $0x10] sm:$0xff] %v467
        %470 = vst [vmem:[#allocation2 + $0x18] sm:$0xff] %v468
        %v471 = vlaneseq
        %v472 = vshrl.u32 %v471, 7
        %v473 = vsub.s32 2, %v472
        %v474 = vrot.slane %v444, %v473
        %v475 = vlaneseq
        %v476 = vshrl.u32 %v475, 7
        %v477 = vsub.s32 2, %v476
        %v478 = vrot.slane %v446, %v477
        %v479 = vmul.f32 %v474, %v444
        %v480 = vmul.f32 %v478, %v446
        %481 = vst [vmem:[#allocation2 + $0x20] sm:$0xff] %v479
        %482 = vst [vmem:[#allocation2 + $0x28] sm:$0xff] %v480
        %v483 = vlaneseq
        %v484 = vshrl.u32 %v483, 7
        %v485 = vsub.s32 3, %v484
        %v486 = vrot.slane %v444, %v485
        %v487 = vlaneseq
        %v488 = vshrl.u32 %v487, 7
        %v489 = vsub.s32 3, %v488
        %v490 = vrot.slane %v446, %v489
        %v491 = vmul.f32 %v486, %v444
        %v492 = vmul.f32 %v490, %v446
        %493 = vst [vmem:[#allocation2 + $0x30] sm:$0xff] %v491
        %494 = vst [vmem:[#allocation2 + $0x38] sm:$0xff] %v492
        %v495 = vlaneseq
        %v496 = vshrl.u32 %v495, 7
        %v497 = vsub.s32 4, %v496
        %v498 = vrot.slane %v444, %v497
        %v499 = vlaneseq
        %v500 = vshrl.u32 %v499, 7
        %v501 = vsub.s32 4, %v500
        %v502 = vrot.slane %v446, %v501
        %v503 = vmul.f32 %v498, %v444
        %v504 = vmul.f32 %v502, %v446
        %505 = vst [vmem:[#allocation2 + $0x40] sm:$0xff] %v503
        %506 = vst [vmem:[#allocation2 + $0x48] sm:$0xff] %v504
        %v507 = vlaneseq
        %v508 = vshrl.u32 %v507, 7
        %v509 = vsub.s32 5, %v508
        %v510 = vrot.slane %v444, %v509
        %v511 = vlaneseq
        %v512 = vshrl.u32 %v511, 7
        %v513 = vsub.s32 5, %v512
        %v514 = vrot.slane %v446, %v513
        %v515 = vmul.f32 %v510, %v444
        %v516 = vmul.f32 %v514, %v446
        %517 = vst [vmem:[#allocation2 + $0x50] sm:$0xff] %v515
        %518 = vst [vmem:[#allocation2 + $0x58] sm:$0xff] %v516
        %v519 = vlaneseq
        %v520 = vshrl.u32 %v519, 7
        %v521 = vsub.s32 6, %v520
        %v522 = vrot.slane %v444, %v521
        %v523 = vlaneseq
        %v524 = vshrl.u32 %v523, 7
        %v525 = vsub.s32 6, %v524
        %v526 = vrot.slane %v446, %v525
        %v527 = vmul.f32 %v522, %v444
        %v528 = vmul.f32 %v526, %v446
        %529 = vst [vmem:[#allocation2 + $0x60] sm:$0xff] %v527
        %530 = vst [vmem:[#allocation2 + $0x68] sm:$0xff] %v528
        %v531 = vlaneseq
        %v532 = vshrl.u32 %v531, 7
        %v533 = vsub.s32 7, %v532
        %v534 = vrot.slane %v444, %v533
        %v535 = vlaneseq
        %v536 = vshrl.u32 %v535, 7
        %v537 = vsub.s32 7, %v536
        %v538 = vrot.slane %v446, %v537
        %v539 = vmul.f32 %v534, %v444
        %v540 = vmul.f32 %v538, %v446
        %541 = vst [vmem:[#allocation2 + $0x70] sm:$0xff] %v539
        %542 = vst [vmem:[#allocation2 + $0x78] sm:$0xff] %v540
        %v543 = vld [vmem:[%s3] sm:$0xf]
        %v544 = vld [vmem:[#allocation2] sm:$0xff]
        %v545 = vld [vmem:[#allocation2 + $0x8] sm:$0xff]
        %v546 = vld [vmem:[#allocation2 + $0x10] sm:$0xff]
        %v547 = vld [vmem:[#allocation2 + $0x18] sm:$0xff]
        %v548 = vld [vmem:[#allocation2 + $0x20] sm:$0xff]
        %v549 = vld [vmem:[#allocation2 + $0x28] sm:$0xff]
        %v550 = vld [vmem:[#allocation2 + $0x30] sm:$0xff]
        %v551 = vld [vmem:[#allocation2 + $0x38] sm:$0xff]
        %v552 = vld [vmem:[#allocation2 + $0x40] sm:$0xff]
        %v553 = vld [vmem:[#allocation2 + $0x48] sm:$0xff]
        %v554 = vld [vmem:[#allocation2 + $0x50] sm:$0xff]
        %v555 = vld [vmem:[#allocation2 + $0x58] sm:$0xff]
        %v556 = vld [vmem:[#allocation2 + $0x60] sm:$0xff]
        %v557 = vld [vmem:[#allocation2 + $0x68] sm:$0xff]
        %v558 = vld [vmem:[#allocation2 + $0x70] sm:$0xff]
        %v559 = vld [vmem:[#allocation2 + $0x78] sm:$0xff]
        %v560 = vld [vmem:[%s4] sm:$0xf]
        %562 = vset.pattern.permute.xlu0 0
        %563 = vperm.xlu0 %562, %v560
        %v564 = vpop.permute.xlu0 %563
        %vm566 = vcmask 523264
        %v568 = vsel %vm566, %v543, 0
        %570 = vmatprep.subr.mxu0 %v545
        %571 = vmatpush1.msra.mxu0 %v544
        %572 = vmatprep.subr.mxu0 %v547
        %573 = vmatpush1.msra.mxu0 %v546
        %574 = vmatprep.subr.mxu0 %v549
        %575 = vmatpush1.msra.mxu0 %v548
        %576 = vmatprep.subr.mxu0 %v551
        %577 = vmatpush1.msra.mxu0 %v550
        %578 = vmatprep.subr.mxu0 %v553
        %579 = vmatpush1.msra.mxu0 %v552
        %580 = vmatprep.subr.mxu0 %v555
        %581 = vmatpush1.msra.mxu0 %v554
        %582 = vmatprep.subr.mxu0 %v557
        %583 = vmatpush1.msra.mxu0 %v556
        %584 = vmatprep.subr.mxu0 %v559
        %585 = vmatpush1.msra.mxu0 %v558
        %586 = vmatprep.subr.mxu0 0.0
        %587 = vmatpush1.msra.mxu0 0.0
        %588 = vmatprep.subr.mxu0 0.0
        %589 = vmatpush1.msra.mxu0 0.0
        %590 = vmatprep.subr.mxu0 0.0
        %591 = vmatpush1.msra.mxu0 0.0
        %592 = vmatprep.subr.mxu0 0.0
        %593 = vmatpush1.msra.mxu0 0.0
        %594 = vmatprep.subr.mxu0 0.0
        %595 = vmatpush1.msra.mxu0 0.0
        %596 = vmatprep.subr.mxu0 0.0
        %597 = vmatpush1.msra.mxu0 0.0
        %598 = vmatprep.subr.mxu0 0.0
        %599 = vmatpush1.msra.mxu0 0.0
        %600 = vmatprep.subr.mxu0 0.0
        %601 = vmatpush1.msra.mxu0 0.0
        %602 = vmatprep.subr.mxu0 0.0
        %603 = vmatpush1.msra.mxu0 0.0
        %604 = vmatprep.subr.mxu0 0.0
        %605 = vmatpush1.msra.mxu0 0.0
        %606 = vmatprep.subr.mxu0 0.0
        %607 = vmatpush1.msra.mxu0 0.0
        %608 = vmatprep.subr.mxu0 0.0
        %609 = vmatpush1.msra.mxu0 0.0
        %610 = vmatprep.subr.mxu0 0.0
        %611 = vmatpush1.msra.mxu0 0.0
        %612 = vmatprep.subr.mxu0 0.0
        %613 = vmatpush1.msra.mxu0 0.0
        %614 = vmatprep.subr.mxu0 0.0
        %615 = vmatpush1.msra.mxu0 0.0
        %616 = vmatprep.subr.mxu0 0.0
        %617 = vmatpush1.msra.mxu0 0.0
        %618 = vmatprep.subr.mxu0 0.0
        %619 = vmatpush1.msra.mxu0 0.0
        %620 = vmatprep.subr.mxu0 0.0
        %621 = vmatpush1.msra.mxu0 0.0
        %622 = vmatprep.subr.mxu0 0.0
        %623 = vmatpush1.msra.mxu0 0.0
        %624 = vmatprep.subr.mxu0 0.0
        %625 = vmatpush1.msra.mxu0 0.0
        %626 = vmatprep.subr.mxu0 0.0
        %627 = vmatpush1.msra.mxu0 0.0
        %628 = vmatprep.subr.mxu0 0.0
        %629 = vmatpush1.msra.mxu0 0.0
        %630 = vmatprep.subr.mxu0 0.0
        %631 = vmatpush1.msra.mxu0 0.0
        %632 = vmatprep.subr.mxu0 0.0
        %633 = vmatpush1.msra.mxu0 0.0
        %634 = vmatprep.mubr.f32.mxu0 0.0
        %635 = vmatmul.mubr.f32.gmra.mrb[0].mxu0 %v568
        %v636 = vpop.f32.mrb[0].mxu0
        %v637 = vadd.f32 %v564, %v636
        %v638 = vpop.f32.mrb[0].mxu0
        %v639 = vadd.f32 %v564, %v638
        %640 = vdwg.mxu0
        %v641 = vmax.f32 %v637, 0.0
        %v642 = vmax.f32 %v639, 0.0
        %v643 = vld [vmem:[%s5] sm:$0xf]
        %v644 = vld [vmem:[%s6] sm:$0xf]
        %v646 = vsel %vm345, %v644, 0
        %648 = vmatprep.subr.mxu0 %v352
        %649 = vmatpush1.msra.mxu0 %v350
        %650 = vmatprep.subr.mxu0 0.0
        %651 = vmatpush1.msra.mxu0 0.0
        %652 = vmatprep.subr.mxu0 0.0
        %653 = vmatpush1.msra.mxu0 0.0
        %654 = vmatprep.subr.mxu0 0.0
        %655 = vmatpush1.msra.mxu0 0.0
        %656 = vmatprep.subr.mxu0 0.0
        %657 = vmatpush1.msra.mxu0 0.0
        %658 = vmatprep.subr.mxu0 0.0
        %659 = vmatpush1.msra.mxu0 0.0
        %660 = vmatprep.subr.mxu0 0.0
        %661 = vmatpush1.msra.mxu0 0.0
        %662 = vmatprep.subr.mxu0 0.0
        %663 = vmatpush1.msra.mxu0 0.0
        %664 = vmatprep.subr.mxu0 0.0
        %665 = vmatpush1.msra.mxu0 0.0
        %666 = vmatprep.subr.mxu0 0.0
        %667 = vmatpush1.msra.mxu0 0.0
        %668 = vmatprep.subr.mxu0 0.0
        %669 = vmatpush1.msra.mxu0 0.0
        %670 = vmatprep.subr.mxu0 0.0
        %671 = vmatpush1.msra.mxu0 0.0
        %672 = vmatprep.subr.mxu0 0.0
        %673 = vmatpush1.msra.mxu0 0.0
        %674 = vmatprep.subr.mxu0 0.0
        %675 = vmatpush1.msra.mxu0 0.0
        %676 = vmatprep.subr.mxu0 0.0
        %677 = vmatpush1.msra.mxu0 0.0
        %678 = vmatprep.subr.mxu0 0.0
        %679 = vmatpush1.msra.mxu0 0.0
        %680 = vmatprep.subr.mxu0 0.0
        %681 = vmatpush1.msra.mxu0 0.0
        %682 = vmatprep.subr.mxu0 0.0
        %683 = vmatpush1.msra.mxu0 0.0
        %684 = vmatprep.subr.mxu0 0.0
        %685 = vmatpush1.msra.mxu0 0.0
        %686 = vmatprep.subr.mxu0 0.0
        %687 = vmatpush1.msra.mxu0 0.0
        %688 = vmatprep.subr.mxu0 0.0
        %689 = vmatpush1.msra.mxu0 0.0
        %690 = vmatprep.subr.mxu0 0.0
        %691 = vmatpush1.msra.mxu0 0.0
        %692 = vmatprep.subr.mxu0 0.0
        %693 = vmatpush1.msra.mxu0 0.0
        %694 = vmatprep.subr.mxu0 0.0
        %695 = vmatpush1.msra.mxu0 0.0
        %696 = vmatprep.subr.mxu0 0.0
        %697 = vmatpush1.msra.mxu0 0.0
        %698 = vmatprep.subr.mxu0 0.0
        %699 = vmatpush1.msra.mxu0 0.0
        %700 = vmatprep.subr.mxu0 0.0
        %701 = vmatpush1.msra.mxu0 0.0
        %702 = vmatprep.subr.mxu0 0.0
        %703 = vmatpush1.msra.mxu0 0.0
        %704 = vmatprep.subr.mxu0 0.0
        %705 = vmatpush1.msra.mxu0 0.0
        %706 = vmatprep.subr.mxu0 0.0
        %707 = vmatpush1.msra.mxu0 0.0
        %708 = vmatprep.subr.mxu0 0.0
        %709 = vmatpush1.msra.mxu0 0.0
        %710 = vmatprep.subr.mxu0 0.0
        %711 = vmatpush1.msra.mxu0 0.0
        %712 = vmatprep.mubr.f32.mxu0 0.0
        %713 = vmatmul.mubr.f32.gmra.mrb[0].mxu0 %v646
        %v714 = vpop.f32.mrb[0].mxu0
        %v715 = vadd.f32 0.0, %v714
        %v716 = vpop.f32.mrb[0].mxu0
        %v717 = vadd.f32 0.0, %v716
        %718 = vdwg.mxu0
        %v720 = vsel %vm345, %v643, 0
        %v723 = vsel %vm349, %v641, 0
        %v726 = vsel %vm349, %v642, 0
        %728 = vmatprep.subr.mxu0 %v726
        %729 = vmatpush1.msra.mxu0 %v723
        %730 = vmatprep.subr.mxu0 0.0
        %731 = vmatpush1.msra.mxu0 0.0
        %732 = vmatprep.subr.mxu0 0.0
        %733 = vmatpush1.msra.mxu0 0.0
        %734 = vmatprep.subr.mxu0 0.0
        %735 = vmatpush1.msra.mxu0 0.0
        %736 = vmatprep.subr.mxu0 0.0
        %737 = vmatpush1.msra.mxu0 0.0
        %738 = vmatprep.subr.mxu0 0.0
        %739 = vmatpush1.msra.mxu0 0.0
        %740 = vmatprep.subr.mxu0 0.0
        %741 = vmatpush1.msra.mxu0 0.0
        %742 = vmatprep.subr.mxu0 0.0
        %743 = vmatpush1.msra.mxu0 0.0
        %744 = vmatprep.subr.mxu0 0.0
        %745 = vmatpush1.msra.mxu0 0.0
        %746 = vmatprep.subr.mxu0 0.0
        %747 = vmatpush1.msra.mxu0 0.0
        %748 = vmatprep.subr.mxu0 0.0
        %749 = vmatpush1.msra.mxu0 0.0
        %750 = vmatprep.subr.mxu0 0.0
        %751 = vmatpush1.msra.mxu0 0.0
        %752 = vmatprep.subr.mxu0 0.0
        %753 = vmatpush1.msra.mxu0 0.0
        %754 = vmatprep.subr.mxu0 0.0
        %755 = vmatpush1.msra.mxu0 0.0
        %756 = vmatprep.subr.mxu0 0.0
        %757 = vmatpush1.msra.mxu0 0.0
        %758 = vmatprep.subr.mxu0 0.0
        %759 = vmatpush1.msra.mxu0 0.0
        %760 = vmatprep.subr.mxu0 0.0
        %761 = vmatpush1.msra.mxu0 0.0
        %762 = vmatprep.subr.mxu0 0.0
        %763 = vmatpush1.msra.mxu0 0.0
        %764 = vmatprep.subr.mxu0 0.0
        %765 = vmatpush1.msra.mxu0 0.0
        %766 = vmatprep.subr.mxu0 0.0
        %767 = vmatpush1.msra.mxu0 0.0
        %768 = vmatprep.subr.mxu0 0.0
        %769 = vmatpush1.msra.mxu0 0.0
        %770 = vmatprep.subr.mxu0 0.0
        %771 = vmatpush1.msra.mxu0 0.0
        %772 = vmatprep.subr.mxu0 0.0
        %773 = vmatpush1.msra.mxu0 0.0
        %774 = vmatprep.subr.mxu0 0.0
        %775 = vmatpush1.msra.mxu0 0.0
        %776 = vmatprep.subr.mxu0 0.0
        %777 = vmatpush1.msra.mxu0 0.0
        %778 = vmatprep.subr.mxu0 0.0
        %779 = vmatpush1.msra.mxu0 0.0
        %780 = vmatprep.subr.mxu0 0.0
        %781 = vmatpush1.msra.mxu0 0.0
        %782 = vmatprep.subr.mxu0 0.0
        %783 = vmatpush1.msra.mxu0 0.0
        %784 = vmatprep.subr.mxu0 0.0
        %785 = vmatpush1.msra.mxu0 0.0
        %786 = vmatprep.subr.mxu0 0.0
        %787 = vmatpush1.msra.mxu0 0.0
        %788 = vmatprep.subr.mxu0 0.0
        %789 = vmatpush1.msra.mxu0 0.0
        %790 = vmatprep.subr.mxu0 0.0
        %791 = vmatpush1.msra.mxu0 0.0
        %792 = vmatprep.mubr.f32.mxu0 0.0
        %793 = vmatmul.mubr.f32.gmra.mrb[0].mxu0 %v720
        %v794 = vpop.f32.mrb[0].mxu0
        %v795 = vadd.f32 %v715, %v794
        %v796 = vpop.f32.mrb[0].mxu0
        %v797 = vadd.f32 %v717, %v796
        %798 = vdwg.mxu0
        %v799 = vld [vmem:[%s7] sm:$0xf]
        %801 = vset.pattern.permute.xlu0 0
        %802 = vperm.xlu0 %801, %v799
        %v803 = vpop.permute.xlu0 %802
        %v805 = vadd.f32 %v795, %v803
        %v806 = vadd.f32 %v797, %v803
        %v809 = vcombine.low %v805, %v806
        %811 = vst [vmem:[%s323] sm:$0xff] %v809
        %s812 = sand.u32 %s219, 1
        %s813 = scalar_lea.sflag [#allocation4], %s812
        %s814 = sand.u32 %s219, 1
        %s815 = smul.addr %s814, 8
        %s816 = scalar_lea.vmem [#allocation3], %s815
        // Predicated region
        $region53: #{tpu_custom_call.1} parent=51 // pred_check
          %p817 = pneg %p229
        $region54: #{tpu_custom_call.1} parent=51 // pred_check_branch
          %819 = sbr.rel (%p817) target = $region56
        $region55: #{tpu_custom_call.1} parent=51 // pred_region
          %s820 = smul.u32 2, %s27
          %s822 = ssub.s32 128, 128
          %823 = vsyncadd %s813, %s822
          %s824 = smul.addr %s26, 2
          %s825 = sadd.s32 %s820, %s824
          %s826 = smul.addr %s825, 64
          %s827 = scalar_lea.hbm %s8, %s826
          %s829 = sshll.u32 %s816, 4
          %s830 = int_to_ptr.vmem [resolvable:$true] %s829
          %832 = dma.vmem_to_hbm [thread:$0]  %s830, 128, %s827, %s813
        $region56: #{tpu_custom_call.1} parent=51 // pred_fallthru
          _
      $region52: #{tpu_custom_call.1} parent=5 // pred_fallthru
        _
      %p833 = scmp.le.s32.totalorder 2, %s17
      // Predicated region
      $region57: #{tpu_custom_call.1} parent=5 // pred_check
        %p834 = pneg %p833
      $region58: #{tpu_custom_call.1} parent=5 // pred_check_branch
        %836 = sbr.rel (%p834) target = $region60
      $region59: #{tpu_custom_call.1} parent=5 // pred_region
        %s837 = ssub.s32 %s17, 2
        // Predicated region
        $region61: #{tpu_custom_call.1} parent=59 // pred_check
          %p838 = pneg %p235
        $region62: #{tpu_custom_call.1} parent=59 // pred_check_branch
          %840 = sbr.rel (%p838) target = $region64
        $region63: #{tpu_custom_call.1} parent=59 // pred_region
          %s841 = sand.u32 %s220, 1
          %s842 = scalar_lea.sflag [#allocation4], %s841
          %s843 = sand.u32 %s220, 1
          %s844 = smul.addr %s843, 8
          %s845 = scalar_lea.vmem [#allocation3], %s844
          %846 = dma.done %s842, 128
        $region64: #{tpu_custom_call.1} parent=59 // pred_fallthru
          _
      $region60: #{tpu_custom_call.1} parent=5 // pred_fallthru
        _
    $region6: #{tpu_custom_call.1} parent=1 // loop_footer
      %s21 = sadd.s32 1, %s17
    $region7: #{tpu_custom_call.1} parent=1 // loop_footer_branch
      %16 = sbr.rel target = $region3
    $region8: #{tpu_custom_call.1} parent=1 // loop_exit
      _
    %847 = vsyncpa [#allocation4], 1
    %s848 = scalar_lea.sflag [#allocation4], 1
    %849 = vsyncpa %s848, 1

</llo_original>
